<compile_context>
chip_gen: v7x
topology: tpu7x:2x2x1
jax: 0.10.0
libtpu: 0.0.40
codegen_flags: <defaults>
</compile_context>

<pallas_src>
import functools

import jax
import jax.numpy as jnp
from jax import lax
from jax.experimental import pallas as pl
from jax.experimental.pallas import tpu as pltpu


def _platt_scaler_kernel(w_ref, b_ref, x_ref, tok_ref, o_ref, acc_ref, *,
                         seq_len, seq_tile, vocab, v_chunk):
    # w_ref, b_ref : (1, 1) f32 in SMEM  (nn.Linear(1, 1) weight / bias)
    # x_ref        : (1, TS, V) logits tile in VMEM (caller's dtype)
    # tok_ref      : (1, TS, 1) i32 tokens tile in VMEM
    # o_ref        : (1, 1, 1)  f32 output block (same block across S tiles)
    # acc_ref      : (1, 1)     f32 VMEM scratch (running sum of token probs)
    s = pl.program_id(1)
    last_s = pl.num_programs(1) - 1

    @pl.when(s == 0)
    def _init():
        acc_ref[...] = jnp.zeros_like(acc_ref)

    tok = tok_ref[...]                       # (1, TS, 1) int32
    num_chunks = vocab // v_chunk            # static (wrapper guarantees V % v_chunk == 0)

    # ---- pass 1: running row max over V lane-chunks (chunks stay in vregs) ----
    def max_body(c, m):
        start = pl.multiple_of(c * v_chunk, v_chunk)
        xc = x_ref[:, :, pl.ds(start, v_chunk)].astype(jnp.float32)
        return jnp.maximum(m, jnp.max(xc, axis=-1, keepdims=True))

    m = lax.fori_loop(0, num_chunks, max_body,
                      jnp.full((1, seq_tile, 1), -jnp.inf, jnp.float32),
                      unroll=True)

    # ---- pass 2: fused exp + denom sum + one-hot-gathered numerator sum ----
    def sum_body(c, carry):
        denom, numer = carry
        start = pl.multiple_of(c * v_chunk, v_chunk)
        xc = x_ref[:, :, pl.ds(start, v_chunk)].astype(jnp.float32)
        e = jnp.exp(xc - m)                                         # (1, TS, v_chunk)
        denom = denom + jnp.sum(e, axis=-1, keepdims=True)          # (1, TS, 1)
        ids = lax.broadcasted_iota(jnp.int32, (1, seq_tile, v_chunk), 2)
        hit = ids == (tok - start)
        numer = numer + jnp.sum(jnp.where(hit, e, 0.0), axis=-1, keepdims=True)
        return denom, numer

    zero = jnp.zeros((1, seq_tile, 1), jnp.float32)
    denom, numer = lax.fori_loop(0, num_chunks, sum_body, (zero, zero),
                                 unroll=True)

    token_probs = numer / denom                                     # (1, TS, 1)

    # Mask rows past S (the tail tile of the cdiv grid reads padded garbage).
    row_ids = lax.broadcasted_iota(jnp.int32, (1, seq_tile, 1), 1)
    valid = row_ids < (seq_len - s * seq_tile)
    token_probs = jnp.where(valid, token_probs, 0.0)

    # Accumulate this tile's partial sum of token probabilities.
    acc_ref[...] += jnp.sum(token_probs, axis=1)                    # (1, 1)

    @pl.when(s == last_s)
    def _finalize():
        conf = acc_ref[...] * (1.0 / seq_len)                       # mean over the FULL S
        w = w_ref[0, 0]
        b = b_ref[0, 0]
        o_ref[...] = jax.nn.sigmoid(conf * w + b).reshape(1, 1, 1).astype(o_ref.dtype)


def _round_up(x, m):
    return ((x + m - 1) // m) * m


def _target_tile_bytes():
    # v7x (~3.2 TB/s HBM per TC) amortizes the ~0.35 us per-step pipeline
    # overhead better with a 16 MiB tile; 8 MiB is already fine on v5e/v6e.
    try:
        kind = jax.devices()[0].device_kind.lower()
        if "v7" in kind:
            return 16 << 20
    except Exception:  # pragma: no cover - defensive
        pass
    return 8 << 20


def _choose_v_chunk(V):
    for c in (1024, 512, 256, 128):
        if V % c == 0:
            return c
    return V  # small / odd vocab: one full-width chunk


def _choose_seq_tile(S, V, itemsize, sublane):
    target = _target_tile_bytes()
    rows = (target // max(1, V * itemsize)) // sublane * sublane
    return max(sublane, rows)


def platt_scaler_confs(x, tokens, weight, bias, *, seq_tile=None, v_chunk=None):
    """x: (B, S, V) logits (f32 or bf16 -- streamed in the caller's dtype),
    tokens: (B, S) ints, weight/bias: scalars of the nn.Linear(1, 1).
    Returns (B,) f32 calibrated confidences."""
    B, S, V = x.shape
    itemsize = jnp.dtype(x.dtype).itemsize
    sublane = {4: 8, 2: 16, 1: 32}.get(itemsize, 8)

    if seq_tile is None:
        seq_tile = _choose_seq_tile(S, V, itemsize, sublane)
    seq_tile = max(sublane, _round_up(int(seq_tile), sublane))
    if seq_tile >= S:
        seq_tile = S  # full-S block: always a legal layout, no tail padding
    num_s_tiles = pl.cdiv(S, seq_tile)

    if v_chunk is None or V % int(v_chunk) != 0:
        v_chunk = _choose_v_chunk(V)
    v_chunk = int(v_chunk)

    w = jnp.asarray(weight, jnp.float32).reshape(1, 1)
    b = jnp.asarray(bias, jnp.float32).reshape(1, 1)
    tok3 = tokens.astype(jnp.int32).reshape(B, S, 1)  # lane dim == full dim (1)

    kernel = functools.partial(_platt_scaler_kernel, seq_len=S,
                               seq_tile=seq_tile, vocab=V, v_chunk=v_chunk)

    # TODO(synk): when B == 1 on v7x, add a leading "parallel" axis that splits
    # S into two halves (two partial sums, mean+sigmoid finished in the
    # wrapper) so both TensorCores are used; no-op on v5e/v6e.
    # TODO(synk): for LLM-scale vocabularies where even a sublane-height
    # (TS, V) tile overflows VMEM, add a V grid axis with online-softmax
    # accumulation finalized on the last V block.

    out = pl.pallas_call(
        kernel,
        out_shape=jax.ShapeDtypeStruct((B, 1, 1), jnp.float32),
        grid_spec=pltpu.PrefetchScalarGridSpec(
            num_scalar_prefetch=0,
            grid=(B, num_s_tiles),
            in_specs=[
                pl.BlockSpec(memory_space=pltpu.MemorySpace.SMEM),            # weight
                pl.BlockSpec(memory_space=pltpu.MemorySpace.SMEM),            # bias
                pl.BlockSpec((1, seq_tile, V), lambda bi, si: (bi, si, 0)),   # logits
                pl.BlockSpec((1, seq_tile, 1), lambda bi, si: (bi, si, 0)),   # tokens
            ],
            out_specs=pl.BlockSpec((1, 1, 1), lambda bi, si: (bi, 0, 0)),
            scratch_shapes=[pltpu.VMEM((1, 1), jnp.float32)],
        ),
        compiler_params=pltpu.CompilerParams(
            dimension_semantics=("parallel", "arbitrary"),
            vmem_limit_bytes=48 * 1024 * 1024,
        ),
    )(w, b, x, tok3)
    return out.reshape(-1)  # .flatten()


def _reference(x, tokens, weight, bias):
    probs = jax.nn.softmax(x, axis=-1)
    token_probs = jnp.take_along_axis(probs, tokens[..., None], axis=-1)[..., 0]
    conf = jnp.mean(token_probs, axis=-1)
    return jax.nn.sigmoid(conf * weight + bias)


if __name__ == "__main__":
    key = jax.random.PRNGKey(0)
    k_x, k_tok, k_w, k_b = jax.random.split(key, 4)

    # nn.Linear(1, 1) parameters, deterministic synthetic init (U(-1, 1) like torch)
    weight = jax.random.uniform(k_w, (), minval=-1.0, maxval=1.0, dtype=jnp.float32)
    bias = jax.random.uniform(k_b, (), minval=-1.0, maxval=1.0, dtype=jnp.float32)

    # Case 1: f32 logits, S divisible by the tile -> 4 accumulating S tiles.
    B, S, V = 2, 64, 512
    x = jax.random.normal(k_x, (B, S, V), dtype=jnp.float32)
    tokens = jax.random.randint(k_tok, (B, S), 0, V, dtype=jnp.int32)
    out = jax.block_until_ready(platt_scaler_confs(x, tokens, weight, bias, seq_tile=16))
    ref = _reference(x, tokens, weight, bias)
    assert out.shape == (B,)
    assert jnp.allclose(out, ref, atol=2e-5, rtol=2e-5), (out, ref)

    # Case 2: bf16 logits streamed natively (no wrapper f32 cast), ragged S
    # (tail tile masked in-kernel), V = 3 lane-chunks of 128.
    B2, S2, V2 = 2, 40, 384
    x2 = jax.random.normal(k_x, (B2, S2, V2), dtype=jnp.float32).astype(jnp.bfloat16)
    tokens2 = jax.random.randint(k_tok, (B2, S2), 0, V2, dtype=jnp.int32)
    out2 = jax.block_until_ready(
        platt_scaler_confs(x2, tokens2, weight, bias, seq_tile=16))
    ref2 = _reference(x2.astype(jnp.float32), tokens2, weight, bias)
    assert out2.shape == (B2,)
    assert jnp.allclose(out2, ref2, atol=2e-5, rtol=2e-5), (out2, ref2)

    print("KERNEL_OK")
</pallas_src>

<mosaic_0001>
module attributes {stable_mosaic.version = 11 : i64} {
  func.func @_platt_scaler_kernel(%arg0: i32, %arg1: i32, %arg2: memref<1x1xf32, #tpu.memory_space<smem>>, %arg3: memref<1x1xf32, #tpu.memory_space<smem>>, %arg4: memref<1x16x512xf32, #tpu.memory_space<vmem>>, %arg5: memref<1x16x1xi32, #tpu.memory_space<vmem>>, %arg6: memref<1x1x1xf32, #tpu.memory_space<vmem>>, %arg7: memref<1x1xf32, #tpu.memory_space<vmem>>) attributes {dimension_semantics = [#tpu.dimension_semantics<parallel>, #tpu.dimension_semantics<arbitrary>], iteration_bounds = array<i64: 2, 4>, scalar_prefetch = 0 : i64, scratch_operands = 1 : i64, tpu.core_type = #tpu.core_type<tc>, window_params = [{transform_indices = @transform_0, window_bounds = array<i64: 1, 1>}, {transform_indices = @transform_1, window_bounds = array<i64: 1, 1>}, {transform_indices = @transform_2, window_bounds = array<i64: 1, 16, 512>}, {transform_indices = @transform_3, window_bounds = array<i64: 1, 16, 1>}, {transform_indices = @transform_4, window_bounds = array<i64: 1, 1, 1>}]} {
    %c0_i32 = arith.constant 0 : i32
    %0 = arith.cmpi eq, %arg1, %c0_i32 : i32
    %1 = arith.extui %0 : i1 to i32
    %c0_i32_0 = arith.constant 0 : i32
    %2 = arith.cmpi ne, %1, %c0_i32_0 : i32
    scf.if %2 {
      %cst_23 = arith.constant 0.000000e+00 : f32
      %48 = vector.broadcast %cst_23 : f32 to vector<1x1xf32>
      %c0_24 = arith.constant 0 : index
      %c0_25 = arith.constant 0 : index
      %49 = vector.load %arg7[%c0_24, %c0_25] : memref<1x1xf32, #tpu.memory_space<vmem>>, vector<1x1xf32>
      tpu.vector_store %arg7[%c0_24, %c0_25], %48 {strides = array<i32>} : memref<1x1xf32, #tpu.memory_space<vmem>>, vector<1x1xf32>,
    } else {
    }
    %c0 = arith.constant 0 : index
    %c0_1 = arith.constant 0 : index
    %c0_2 = arith.constant 0 : index
    %3 = vector.load %arg5[%c0, %c0_1, %c0_2] : memref<1x16x1xi32, #tpu.memory_space<vmem>>, vector<1x16x1xi32>
    %cst = arith.constant 0xFF800000 : f32
    %4 = vector.broadcast %cst : f32 to vector<1x16x1xf32>
    %c0_i32_3 = arith.constant 0 : i32
    %c512_i32 = arith.constant 512 : i32
    %5 = arith.muli %c0_i32_3, %c512_i32 : i32
    %6 = tpu.assume_multiple %5, 512 : i32
    %c0_4 = arith.constant 0 : index
    %c0_5 = arith.constant 0 : index
    %7 = arith.index_cast %6 : i32 to index
    %8 = vector.load %arg4[%c0_4, %c0_5, %7] : memref<1x16x512xf32, #tpu.memory_space<vmem>>, vector<1x16x512xf32>
    %cst_6 = arith.constant dense<0xFF800000> : vector<1x16xf32>
    %9 = vector.multi_reduction <maximumf>, %8, %cst_6 [2] : vector<1x16x512xf32> to vector<1x16xf32>
    %10 = vector.shape_cast %9 : vector<1x16xf32> to vector<1x16x1xf32>
    %11 = arith.maximumf %4, %10 : vector<1x16x1xf32>
    %c1_i32 = arith.constant 1 : i32
    %cst_7 = arith.constant 0.000000e+00 : f32
    %12 = vector.broadcast %cst_7 : f32 to vector<1x16x1xf32>
    %c0_i32_8 = arith.constant 0 : i32
    %c512_i32_9 = arith.constant 512 : i32
    %13 = arith.muli %c0_i32_8, %c512_i32_9 : i32
    %14 = tpu.assume_multiple %13, 512 : i32
    %c0_10 = arith.constant 0 : index
    %c0_11 = arith.constant 0 : index
    %15 = arith.index_cast %14 : i32 to index
    %16 = vector.load %arg4[%c0_10, %c0_11, %15] : memref<1x16x512xf32, #tpu.memory_space<vmem>>, vector<1x16x512xf32>
    %17 = vector.broadcast %11 : vector<1x16x1xf32> to vector<1x16x512xf32>
    %18 = arith.subf %16, %17 : vector<1x16x512xf32>
    %19 = math.exp %18 : vector<1x16x512xf32>
    %cst_12 = arith.constant dense<0.000000e+00> : vector<1x16xf32>
    %20 = vector.multi_reduction <add>, %19, %cst_12 [2] : vector<1x16x512xf32> to vector<1x16xf32>
    %21 = vector.shape_cast %20 : vector<1x16xf32> to vector<1x16x1xf32>
    %22 = arith.addf %12, %21 : vector<1x16x1xf32>
    %23 = tpu.iota {dimensions = array<i32: 2>} : vector<1x16x512xi32>
    %24 = vector.broadcast %14 : i32 to vector<1x16x1xi32>
    %25 = arith.subi %3, %24 : vector<1x16x1xi32>
    %26 = vector.broadcast %25 : vector<1x16x1xi32> to vector<1x16x512xi32>
    %27 = arith.cmpi eq, %23, %26 : vector<1x16x512xi32>
    %cst_13 = arith.constant 0.000000e+00 : f32
    %28 = vector.broadcast %cst_13 : f32 to vector<1x16x512xf32>
    %29 = arith.select %27, %19, %28 : vector<1x16x512xi1>, vector<1x16x512xf32>
    %cst_14 = arith.constant dense<0.000000e+00> : vector<1x16xf32>
    %30 = vector.multi_reduction <add>, %29, %cst_14 [2] : vector<1x16x512xf32> to vector<1x16xf32>
    %31 = vector.shape_cast %30 : vector<1x16xf32> to vector<1x16x1xf32>
    %32 = arith.addf %12, %31 : vector<1x16x1xf32>
    %c1_i32_15 = arith.constant 1 : i32
    %33 = arith.divf %32, %22 : vector<1x16x1xf32>
    %34 = tpu.iota {dimensions = array<i32: 1>} : vector<1x16x1xi32>
    %c16_i32 = arith.constant 16 : i32
    %35 = arith.muli %arg1, %c16_i32 : i32
    %c64_i32 = arith.constant 64 : i32
    %36 = arith.subi %c64_i32, %35 : i32
    %37 = vector.broadcast %36 : i32 to vector<1x16x1xi32>
    %38 = arith.cmpi slt, %34, %37 : vector<1x16x1xi32>
    %cst_16 = arith.constant 0.000000e+00 : f32
    %39 = vector.broadcast %cst_16 : f32 to vector<1x16x1xf32>
    %40 = arith.select %38, %33, %39 : vector<1x16x1xi1>, vector<1x16x1xf32>
    %c0_17 = arith.constant 0 : index
    %c0_18 = arith.constant 0 : index
    %41 = vector.load %arg7[%c0_17, %c0_18] : memref<1x1xf32, #tpu.memory_space<vmem>>, vector<1x1xf32>
    %cst_19 = arith.constant dense<0.000000e+00> : vector<1x1xf32>
    %42 = vector.multi_reduction <add>, %40, %cst_19 [1] : vector<1x16x1xf32> to vector<1x1xf32>
    %43 = arith.addf %41, %42 : vector<1x1xf32>
    %c0_20 = arith.constant 0 : index
    %c0_21 = arith.constant 0 : index
    %44 = vector.load %arg7[%c0_20, %c0_21] : memref<1x1xf32, #tpu.memory_space<vmem>>, vector<1x1xf32>
    tpu.vector_store %arg7[%c0_20, %c0_21], %43 {strides = array<i32>} : memref<1x1xf32, #tpu.memory_space<vmem>>, vector<1x1xf32>,
    %c3_i32 = arith.constant 3 : i32
    %45 = arith.cmpi eq, %arg1, %c3_i32 : i32
    %46 = arith.extui %45 : i1 to i32
    %c0_i32_22 = arith.constant 0 : i32
    %47 = arith.cmpi ne, %46, %c0_i32_22 : i32
    scf.if %47 {
      %c0_23 = arith.constant 0 : index
      %c0_24 = arith.constant 0 : index
      %48 = vector.load %arg7[%c0_23, %c0_24] : memref<1x1xf32, #tpu.memory_space<vmem>>, vector<1x1xf32>
      %cst_25 = arith.constant 1.562500e-02 : f32
      %49 = vector.broadcast %cst_25 : f32 to vector<1x1xf32>
      %50 = arith.mulf %48, %49 : vector<1x1xf32>
      %c0_26 = arith.constant 0 : index
      %c0_27 = arith.constant 0 : index
      %51 = memref.load %arg2[%c0_26, %c0_27] : memref<1x1xf32, #tpu.memory_space<smem>>
      %c0_28 = arith.constant 0 : index
      %c0_29 = arith.constant 0 : index
      %52 = memref.load %arg3[%c0_28, %c0_29] : memref<1x1xf32, #tpu.memory_space<smem>>
      %53 = vector.broadcast %51 : f32 to vector<1x1xf32>
      %54 = arith.mulf %50, %53 : vector<1x1xf32>
      %55 = vector.broadcast %52 : f32 to vector<1x1xf32>
      %56 = arith.addf %54, %55 : vector<1x1xf32>
      %57 = arith.negf %56 : vector<1x1xf32>
      %58 = math.exp %57 : vector<1x1xf32>
      %cst_30 = arith.constant 1.000000e+00 : f32
      %59 = vector.broadcast %cst_30 : f32 to vector<1x1xf32>
      %60 = arith.addf %59, %58 : vector<1x1xf32>
      %61 = arith.divf %59, %60 : vector<1x1xf32>
      %62 = vector.shape_cast %61 : vector<1x1xf32> to vector<1x1x1xf32>
      %c0_31 = arith.constant 0 : index
      %c0_32 = arith.constant 0 : index
      %c0_33 = arith.constant 0 : index
      %63 = vector.load %arg6[%c0_31, %c0_32, %c0_33] : memref<1x1x1xf32, #tpu.memory_space<vmem>>, vector<1x1x1xf32>
      tpu.vector_store %arg6[%c0_31, %c0_32, %c0_33], %62 {strides = array<i32>} : memref<1x1x1xf32, #tpu.memory_space<vmem>>, vector<1x1x1xf32>,
    } else {
    }
    return
  }
  func.func @transform_0(%arg0: i32, %arg1: i32) -> (i32, i32) {
    %c0_i32 = arith.constant 0 : i32
    %c0_i32_0 = arith.constant 0 : i32
    %c0_i32_1 = arith.constant 0 : i32
    return %c0_i32, %c0_i32_0 : i32, i32
  }
  func.func @transform_1(%arg0: i32, %arg1: i32) -> (i32, i32) {
    %c0_i32 = arith.constant 0 : i32
    %c0_i32_0 = arith.constant 0 : i32
    %c0_i32_1 = arith.constant 0 : i32
    return %c0_i32, %c0_i32_0 : i32, i32
  }
  func.func @transform_2(%arg0: i32, %arg1: i32) -> (i32, i32, i32) {
    %c0_i32 = arith.constant 0 : i32
    %c0_i32_0 = arith.constant 0 : i32
    return %arg0, %arg1, %c0_i32 : i32, i32, i32
  }
  func.func @transform_3(%arg0: i32, %arg1: i32) -> (i32, i32, i32) {
    %c0_i32 = arith.constant 0 : i32
    %c0_i32_0 = arith.constant 0 : i32
    return %arg0, %arg1, %c0_i32 : i32, i32, i32
  }
  func.func @transform_4(%arg0: i32, %arg1: i32) -> (i32, i32, i32) {
    %c0_i32 = arith.constant 0 : i32
    %c0_i32_0 = arith.constant 0 : i32
    %c0_i32_1 = arith.constant 0 : i32
    return %arg0, %c0_i32, %c0_i32_0 : i32, i32, i32
  }
}

</mosaic_0001>

<llo_original>
// kernel: tpu_custom_call.1
$region0: #{tpu_custom_call.1}
  #allocation0 [shape = 'u32[]', space=smem, size = 0x4, offset = 0x4, fixed_abs, tag = 'smem constant byte address 0x4 - core index']
  #allocation1 [shape = 'u32[144,128]{1,0:T(1,128)}', space=vmem, size = 0x12000, scoped, tag = 'internal scratch']
  #allocation2 [shape = 'f32[1,1]{1,0:T(1,128)}', space=vmem, size = 0x200, scoped, tag = 'scratch operand']
  #allocation3 [shape = 'f32[1,1]{1,0:T(1,128)S(6)}', space=smem, size = 0x200, scoped, tag = 'scoped memory for tpu_custom_call.1']
  #allocation4 [shape = 'f32[1,1]{1,0:T(1,128)S(6)}', space=smem, size = 0x200, scoped, tag = 'scoped memory for tpu_custom_call.1']
  %s0 = inlined_call_operand.<no memory space> [shape: f32[1,1], index: 0, kind: input, shape index: {}]
  %s1 = inlined_call_operand.<no memory space> [shape: f32[1,1], index: 1, kind: input, shape index: {}]
  %s2 = inlined_call_operand.hbm [shape: f32[2,64,512], index: 2, kind: input, shape index: {}]
  %s3 = inlined_call_operand.vmem [shape: s32[2,64,1], index: 3, kind: input, shape index: {}]
  %s4 = inlined_call_operand.vmem [shape: f32[2,1,1], index: 4, kind: output, shape index: {}]
  %s5 = sld [smem:[#allocation0]]
  $region61: #{tpu_custom_call.1} parent=0
    _
  %s7 = ssub.s32 1, %s5
  %s8 = scalar_select 0, %s7, %s5
  %9 = sst [smem:[#allocation3]] %s0
  %10 = sst [smem:[#allocation4]] %s1
  $region1: #{tpu_custom_call.1} parent=0
    #allocation5 [shape = 'u8[65536]{0}', space=vmem, size = 0x10000, scoped, tag = 'input window, operand 2']
    #allocation6 [shape = 's32[2]{0}', space=sflag, size = 0x8, scoped, tag = 'scoped memory for tpu_custom_call.1']
    %11 = vsyncpa [#allocation6], 0
    %s12 = scalar_lea.sflag [#allocation6], 1
    %13 = vsyncpa %s12, 0
    loop: start=0, step=1, limit=10
    $region2: #{tpu_custom_call.1} parent=1 // loop_pre_header
      _
    $region3: #{tpu_custom_call.1} parent=1 // loop_header
      %s15 = sphi 0, %s19
      %p16 = scmp.ge.s32.totalorder %s15, 10
      %s22 = sphi 0, %s34
      %s23 = sphi 0, %s30
      %s24 = sphi 0, %s22
      %s25 = sphi 0, %s23
      %s26 = sphi 0, %s24
      %s27 = sphi 0, %s25
      %s35 = sphi 0, %s35
      %s37 = sphi 0, %s35
      %s38 = sphi 0, %s37
      %s52 = sphi 0, %s38
      %s56 = sphi 0, %s56
      %s58 = sphi 0, %s56
      %s59 = sphi 0, %s58
      %s73 = sphi 0, %s59
      %s81 = sphi 0, %s83
      %s84 = sphi 0, %s81
      %s85 = sphi 0, %s84
      %s101 = sphi 0, %s85
      %s109 = sphi 0, %s111
      %s112 = sphi 0, %s109
      %s113 = sphi 0, %s112
      %s129 = sphi 0, %s113
      %s135 = sphi 0, %s137
      %s138 = sphi 0, %s135
      %s139 = sphi 0, %s138
      %s155 = sphi 0, %s139
    $region4: #{tpu_custom_call.1} parent=1 // loop_header_branch
      %18 = sbr.rel (%p16) target = $region8
    $region5: #{tpu_custom_call.1} parent=1 // loop_body
      %s20 = ssub.s32 %s15, 1
      %s21 = ssub.s32 %s15, 2
      %s28 = sadd.s32 1, %s23
      %p29 = scmp.ge.s32.totalorder %s28, 4
      %s30 = scalar_select %p29, 0, %s28
      %s31 = sadd.s32 1, %s22
      %s32 = scalar_select %p29, %s31, %s22
      %p33 = scmp.ge.s32.totalorder %s32, 2
      %s34 = scalar_select %p33, 0, %s32
      %s36 = sadd.s32 %s35, 1
      %p39 = scmp.eq.s32.totalorder %s15, 7
      %p40 = scmp.ne.s32.totalorder %s35, %s37
      %p41 = scmp.eq.s32.totalorder %s15, 0
      %p42 = por %p40, %p41
      %p43 = scmp.ne.s32.totalorder %s35, %s37
      %p44 = scmp.eq.s32.totalorder %s20, 7
      %p45 = por %p43, %p44
      %p46 = scmp.ne.s32.totalorder %s37, %s38
      %p47 = scmp.eq.s32.totalorder %s20, 0
      %p48 = por %p46, %p47
      %p49 = scmp.ne.s32.totalorder %s37, %s38
      %p50 = scmp.eq.s32.totalorder %s21, 7
      %p51 = por %p49, %p50
      %p53 = scmp.ne.s32.totalorder %s38, %s52
      %p54 = scmp.eq.s32.totalorder %s21, 0
      %p55 = por %p53, %p54
      %s57 = sadd.s32 %s56, 1
      %p60 = scmp.eq.s32.totalorder %s15, 7
      %p61 = scmp.ne.s32.totalorder %s56, %s58
      %p62 = scmp.eq.s32.totalorder %s15, 0
      %p63 = por %p61, %p62
      %p64 = scmp.ne.s32.totalorder %s56, %s58
      %p65 = scmp.eq.s32.totalorder %s20, 7
      %p66 = por %p64, %p65
      %p67 = scmp.ne.s32.totalorder %s58, %s59
      %p68 = scmp.eq.s32.totalorder %s20, 0
      %p69 = por %p67, %p68
      %p70 = scmp.ne.s32.totalorder %s58, %s59
      %p71 = scmp.eq.s32.totalorder %s21, 7
      %p72 = por %p70, %p71
      %p74 = scmp.ne.s32.totalorder %s59, %s73
      %p75 = scmp.eq.s32.totalorder %s21, 0
      %p76 = por %p74, %p75
      %s77 = ssub.s32 %s22, %s34
      %s78 = ssub.s32 %s23, %s30
      %s79 = sor.u32 %s77, %s78
      %p80 = scmp.eq.s32.totalorder %s79, 0
      %s82 = sadd.s32 %s81, 1
      %s83 = scalar_select %p80, %s81, %s82
      %p86 = pneg %p80
      %p87 = scmp.eq.s32.totalorder %s15, 7
      %p88 = por %p86, %p87
      %p89 = scmp.ne.s32.totalorder %s81, %s84
      %p90 = scmp.eq.s32.totalorder %s15, 0
      %p91 = por %p89, %p90
      %p92 = scmp.ne.s32.totalorder %s81, %s84
      %p93 = scmp.eq.s32.totalorder %s20, 7
      %p94 = por %p92, %p93
      %p95 = scmp.ne.s32.totalorder %s84, %s85
      %p96 = scmp.eq.s32.totalorder %s20, 0
      %p97 = por %p95, %p96
      %p98 = scmp.ne.s32.totalorder %s84, %s85
      %p99 = scmp.eq.s32.totalorder %s21, 7
      %p100 = por %p98, %p99
      %p102 = scmp.ne.s32.totalorder %s85, %s101
      %p103 = scmp.eq.s32.totalorder %s21, 0
      %p104 = por %p102, %p103
      %s105 = ssub.s32 %s22, %s34
      %s106 = ssub.s32 %s23, %s30
      %s107 = sor.u32 %s105, %s106
      %p108 = scmp.eq.s32.totalorder %s107, 0
      %s110 = sadd.s32 %s109, 1
      %s111 = scalar_select %p108, %s109, %s110
      %p114 = pneg %p108
      %p115 = scmp.eq.s32.totalorder %s15, 7
      %p116 = por %p114, %p115
      %p117 = scmp.ne.s32.totalorder %s109, %s112
      %p118 = scmp.eq.s32.totalorder %s15, 0
      %p119 = por %p117, %p118
      %p120 = scmp.ne.s32.totalorder %s109, %s112
      %p121 = scmp.eq.s32.totalorder %s20, 7
      %p122 = por %p120, %p121
      %p123 = scmp.ne.s32.totalorder %s112, %s113
      %p124 = scmp.eq.s32.totalorder %s20, 0
      %p125 = por %p123, %p124
      %p126 = scmp.ne.s32.totalorder %s112, %s113
      %p127 = scmp.eq.s32.totalorder %s21, 7
      %p128 = por %p126, %p127
      %p130 = scmp.ne.s32.totalorder %s113, %s129
      %p131 = scmp.eq.s32.totalorder %s21, 0
      %p132 = por %p130, %p131
      %s133 = ssub.s32 %s22, %s34
      %p134 = scmp.eq.s32.totalorder %s133, 0
      %s136 = sadd.s32 %s135, 1
      %s137 = scalar_select %p134, %s135, %s136
      %p140 = pneg %p134
      %p141 = scmp.eq.s32.totalorder %s15, 7
      %p142 = por %p140, %p141
      %p143 = scmp.ne.s32.totalorder %s135, %s138
      %p144 = scmp.eq.s32.totalorder %s15, 0
      %p145 = por %p143, %p144
      %p146 = scmp.ne.s32.totalorder %s135, %s138
      %p147 = scmp.eq.s32.totalorder %s20, 7
      %p148 = por %p146, %p147
      %p149 = scmp.ne.s32.totalorder %s138, %s139
      %p150 = scmp.eq.s32.totalorder %s20, 0
      %p151 = por %p149, %p150
      %p152 = scmp.ne.s32.totalorder %s138, %s139
      %p153 = scmp.eq.s32.totalorder %s21, 7
      %p154 = por %p152, %p153
      %p156 = scmp.ne.s32.totalorder %s139, %s155
      %p157 = scmp.eq.s32.totalorder %s21, 0
      %p158 = por %p156, %p157
      %p159 = scmp.le.s32.totalorder 1, %s15
      %p160 = scmp.lt.s32.totalorder %s15, 9
      %p161 = pnand %p159, %p160
      %p162 = pneg %p161
      // Predicated region
      $region9: #{tpu_custom_call.1} parent=5 // pred_check
        _
      $region10: #{tpu_custom_call.1} parent=5 // pred_check_branch
        %164 = sbr.rel (%p161) target = $region12
      $region11: #{tpu_custom_call.1} parent=5 // pred_region
        %s165 = ssub.s32 %s15, 1
        // Predicated region
        $region13: #{tpu_custom_call.1} parent=11 // pred_check
          %p166 = pneg %p48
        $region14: #{tpu_custom_call.1} parent=11 // pred_check_branch
          %168 = sbr.rel (%p166) target = $region16
        $region15: #{tpu_custom_call.1} parent=11 // pred_region
          _
        $region16: #{tpu_custom_call.1} parent=11 // pred_fallthru
          _
        // Predicated region
        $region17: #{tpu_custom_call.1} parent=11 // pred_check
          %p169 = pneg %p69
        $region18: #{tpu_custom_call.1} parent=11 // pred_check_branch
          %171 = sbr.rel (%p169) target = $region20
        $region19: #{tpu_custom_call.1} parent=11 // pred_region
          _
        $region20: #{tpu_custom_call.1} parent=11 // pred_fallthru
          _
      $region12: #{tpu_custom_call.1} parent=5 // pred_fallthru
        _
      %p172 = scmp.lt.s32.totalorder %s15, 8
      // Predicated region
      $region21: #{tpu_custom_call.1} parent=5 // pred_check
        %p173 = pneg %p172
      $region22: #{tpu_custom_call.1} parent=5 // pred_check_branch
        %175 = sbr.rel (%p173) target = $region24
      $region23: #{tpu_custom_call.1} parent=5 // pred_region
        // Predicated region
        $region25: #{tpu_custom_call.1} parent=23 // pred_check
          %p176 = pneg %p91
        $region26: #{tpu_custom_call.1} parent=23 // pred_check_branch
          %178 = sbr.rel (%p176) target = $region28
        $region27: #{tpu_custom_call.1} parent=23 // pred_region
          %s179 = sand.u32 %s81, 1
          %s180 = scalar_lea.sflag [#allocation6], %s179
          %s181 = sand.u32 %s81, 1
          %s182 = smul.addr %s181, 64
          %s183 = scalar_lea.vmem [#allocation5], %s182
          %s184 = smul.u32 2, %s23
          %s186 = ssub.s32 1024, 1024
          %187 = vsyncadd %s180, %s186
          %s188 = smul.addr %s184, 4
          %s189 = smul.addr %s22, 32
          %s190 = sadd.s32 %s188, %s189
          %s191 = smul.addr %s190, 128
          %s192 = scalar_lea.hbm %s2, %s191
          %s193 = sshll.u32 %s183, 4
          %s194 = int_to_ptr.vmem [resolvable:$true] %s193
          %199 = dma.hbm_to_vmem [thread:$0]  %s192, 1024, %s194, %s180, 512, 512, 32
        $region28: #{tpu_custom_call.1} parent=23 // pred_fallthru
          _
        // Predicated region
        $region29: #{tpu_custom_call.1} parent=23 // pred_check
          %p200 = pneg %p119
        $region30: #{tpu_custom_call.1} parent=23 // pred_check_branch
          %202 = sbr.rel (%p200) target = $region32
        $region31: #{tpu_custom_call.1} parent=23 // pred_region
          %s203 = smul.u32 2, %s23
          %p204 = scmp.lt.s32.totalorder %s22, 1
          %s205 = scalar_select %p204, %s22, 1
          %p206 = scmp.lt.s32.totalorder %s203, 7
          %s207 = scalar_select %p206, %s203, 7
          %s208 = smul.addr %s205, 8
          %s209 = sadd.s32 %s207, %s208
          %s210 = smul.addr %s209, 8
          %s211 = scalar_lea.vmem %s3, %s210
          %s212 = smul.u32 2, %s23
        $region32: #{tpu_custom_call.1} parent=23 // pred_fallthru
          _
      $region24: #{tpu_custom_call.1} parent=5 // pred_fallthru
        _
      %p213 = scmp.le.s32.totalorder 1, %s15
      %p214 = scmp.lt.s32.totalorder %s15, 9
      %p215 = pnand %p213, %p214
      %p216 = pneg %p215
      // Predicated region
      $region33: #{tpu_custom_call.1} parent=5 // pred_check
        _
      $region34: #{tpu_custom_call.1} parent=5 // pred_check_branch
        %218 = sbr.rel (%p215) target = $region36
      $region35: #{tpu_custom_call.1} parent=5 // pred_region
        %s219 = ssub.s32 %s15, 1
        %s220 = sand.u32 %s84, 1
        %s221 = scalar_lea.sflag [#allocation6], %s220
        %s222 = sand.u32 %s84, 1
        %s223 = smul.addr %s222, 64
        %s224 = scalar_lea.vmem [#allocation5], %s223
        // Predicated region
        $region37: #{tpu_custom_call.1} parent=35 // pred_check
          %p225 = pneg %p97
        $region38: #{tpu_custom_call.1} parent=35 // pred_check_branch
          %227 = sbr.rel (%p225) target = $region40
        $region39: #{tpu_custom_call.1} parent=35 // pred_region
          %228 = dma.done %s221, 1024
        $region40: #{tpu_custom_call.1} parent=35 // pred_fallthru
          _
        %p229 = pneg %p48
        %p230 = pneg %p45
        %p231 = pneg %p69
        %p232 = pneg %p66
        %s233 = sand.u32 %s84, 1
        %s234 = scalar_lea.sflag [#allocation6], %s233
        %s235 = sand.u32 %s84, 1
        %s236 = smul.addr %s235, 64
        %s237 = scalar_lea.vmem [#allocation5], %s236
        %p238 = pneg %p97
        %p239 = pneg %p94
        %s240 = smul.u32 2, %s25
        %p241 = scmp.lt.s32.totalorder %s24, 1
        %s242 = scalar_select %p241, %s24, 1
        %p243 = scmp.lt.s32.totalorder %s240, 7
        %s244 = scalar_select %p243, %s240, 7
        %s245 = smul.addr %s242, 8
        %s246 = sadd.s32 %s244, %s245
        %s247 = smul.addr %s246, 8
        %s248 = scalar_lea.vmem %s3, %s247
        %p249 = pneg %p125
        %p250 = pneg %p122
        %p251 = pneg %p151
        %p252 = pneg %p148
        %p253 = scmp.lt.s32.totalorder %s24, 1
        %s254 = scalar_select %p253, %s24, 1
        %s255 = scalar_lea.vmem %s4, %s254
        %s256 = smul.u32 2, %s25
        %s257 = smul.u32 2, %s25
        %p258 = scmp.lt.s32.totalorder %s24, 1
        %s259 = scalar_select %p258, %s24, 1
        %p260 = scmp.lt.s32.totalorder %s257, 7
        %s261 = scalar_select %p260, %s257, 7
        %s262 = smul.addr %s259, 8
        %s263 = sadd.s32 %s261, %s262
        %s264 = smul.addr %s263, 8
        %s265 = scalar_lea.vmem %s3, %s264
        %s266 = smul.u32 2, %s25
        %p267 = scmp.lt.s32.totalorder %s24, 1
        %s268 = scalar_select %p267, %s24, 1
        %s269 = scalar_lea.vmem %s4, %s268
        %p270 = scmp.eq.s32.totalorder %s25, 0
        // Predicated region
        $region41: #{tpu_custom_call.1} parent=35 // pred_check
          %p271 = pneg %p270
        $region42: #{tpu_custom_call.1} parent=35 // pred_check_branch
          %273 = sbr.rel (%p271) target = $region44
        $region43: #{tpu_custom_call.1} parent=35 // pred_region
          %vm274 = vcmask 0
          %275 = vst.msk [vmem:[#allocation2] sm:$0x1] %vm274, 0.0
        $region44: #{tpu_custom_call.1} parent=35 // pred_fallthru
          _
        %v276 = vld [vmem:[%s265] sm:$0xff]
        %v277 = vld [vmem:[%s265 + $0x8] sm:$0xff]
        %v278 = vld [vmem:[%s224] sm:$0xff]
        %v279 = vld [vmem:[%s224 + $0x8] sm:$0xff]
        %v280 = vld [vmem:[%s224 + $0x10] sm:$0xff]
        %v281 = vld [vmem:[%s224 + $0x18] sm:$0xff]
        %v282 = vld [vmem:[%s224 + $0x20] sm:$0xff]
        %v283 = vld [vmem:[%s224 + $0x28] sm:$0xff]
        %v284 = vld [vmem:[%s224 + $0x30] sm:$0xff]
        %v285 = vld [vmem:[%s224 + $0x38] sm:$0xff]
        %v286 = vmax.f32 %v278, %v280
        %v287 = vmax.f32 %v279, %v281
        %v288 = vmax.f32 %v286, %v287
        %289 = vmax.xlane.f32.xlu0 %v288
        %v290 = vpop.xlane.xlu0 %289
        %v291 = vmax.f32 %v282, %v284
        %v292 = vmax.f32 %v283, %v285
        %v293 = vmax.f32 %v291, %v292
        %294 = vmax.xlane.f32.xlu0 %v293
        %v295 = vpop.xlane.xlu0 %294
        %v296 = vsub.f32 %v278, %v290
        %v297 = vsub.f32 %v279, %v290
        %v298 = vsub.f32 %v280, %v290
        %v299 = vsub.f32 %v281, %v290
        %v300 = vsub.f32 %v282, %v295
        %v301 = vsub.f32 %v283, %v295
        %v302 = vsub.f32 %v284, %v295
        %v303 = vsub.f32 %v285, %v295
        %v304 = vmul.f32 %v296, 1.442695
        %v305 = vpow.pop %v304
        %v306 = vmul.f32 %v297, 1.442695
        %v307 = vpow.pop %v306
        %v308 = vmul.f32 %v298, 1.442695
        %v309 = vpow.pop %v308
        %v310 = vmul.f32 %v299, 1.442695
        %v311 = vpow.pop %v310
        %v312 = vmul.f32 %v300, 1.442695
        %v313 = vpow.pop %v312
        %v314 = vmul.f32 %v301, 1.442695
        %v315 = vpow.pop %v314
        %v316 = vmul.f32 %v302, 1.442695
        %v317 = vpow.pop %v316
        %v318 = vmul.f32 %v303, 1.442695
        %v319 = vpow.pop %v318
        %v320 = vadd.f32 %v305, %v307
        %v321 = vadd.f32 %v320, %v309
        %v322 = vadd.f32 %v321, %v311
        %323 = vadd.xlane.f32.xlu0 %v322
        %v324 = vpop.xlane.xlu0 %323
        %v325 = vadd.f32 %v313, %v315
        %v326 = vadd.f32 %v325, %v317
        %v327 = vadd.f32 %v326, %v319
        %328 = vadd.xlane.f32.xlu0 %v327
        %v329 = vpop.xlane.xlu0 %328
        %v330 = vadd.f32 %v324, 0.0
        %v331 = vadd.f32 %v329, 0.0
        %v332 = vlaneseq
        %v333 = vand.u32 %v332, 127
        %v334 = vadd.s32 %v333, 128
        %v335 = vadd.s32 %v333, 256
        %v336 = vadd.s32 %v333, 384
        %v337 = vstv 0
        %v338 = vsub.s32 %v276, %v337
        %v339 = vsub.s32 %v277, %v337
        %340 = vset.pattern.permute.xlu0 0
        %341 = vperm.xlu0 %340, %v338
        %v342 = vpop.permute.xlu0 %341
        %343 = vset.pattern.permute.xlu0 0
        %344 = vperm.xlu0 %343, %v339
        %v345 = vpop.permute.xlu0 %344
        %vm346 = vcmp.eq.s32.totalorder %v333, %v342
        %vm347 = vcmp.eq.s32.totalorder %v334, %v342
        %vm348 = vcmp.eq.s32.totalorder %v335, %v342
        %vm349 = vcmp.eq.s32.totalorder %v336, %v342
        %vm350 = vcmp.eq.s32.totalorder %v333, %v345
        %vm351 = vcmp.eq.s32.totalorder %v334, %v345
        %vm352 = vcmp.eq.s32.totalorder %v335, %v345
        %vm353 = vcmp.eq.s32.totalorder %v336, %v345
        %v354 = vsel %vm346, %v305, 0.0
        %v355 = vsel %vm347, %v307, 0.0
        %v356 = vsel %vm348, %v309, 0.0
        %v357 = vsel %vm349, %v311, 0.0
        %v358 = vsel %vm350, %v313, 0.0
        %v359 = vsel %vm351, %v315, 0.0
        %v360 = vsel %vm352, %v317, 0.0
        %v361 = vsel %vm353, %v319, 0.0
        %v362 = vadd.f32 %v354, %v355
        %v363 = vadd.f32 %v362, %v356
        %v364 = vadd.f32 %v363, %v357
        %365 = vadd.xlane.f32.xlu0 %v364
        %v366 = vpop.xlane.xlu0 %365
        %v367 = vadd.f32 %v358, %v359
        %v368 = vadd.f32 %v367, %v360
        %v369 = vadd.f32 %v368, %v361
        %370 = vadd.xlane.f32.xlu0 %v369
        %v371 = vpop.xlane.xlu0 %370
        %v372 = vadd.f32 %v366, 0.0
        %v373 = vadd.f32 %v371, 0.0
        %v374 = vrcp.pop %v330
        %v375 = vmul.f32 %v372, %v374
        %v376 = vrcp.pop %v331
        %v377 = vmul.f32 %v373, %v376
        %v378 = vlaneseq
        %v379 = vshrl.u32 %v378, 7
        %v380 = vadd.s32 %v379, 8
        %s381 = smul.u32 %s25, 16
        %s382 = ssub.s32 64, %s381
        %v383 = vstv %s382
        %vm384 = vcmp.lt.s32.totalorder %v379, %v383
        %vm385 = vcmp.lt.s32.totalorder %v380, %v383
        %v386 = vsel %vm384, %v375, 0.0
        %v387 = vsel %vm385, %v377, 0.0
        %v388 = vld [vmem:[#allocation2] sm:$0x1]
        %v389 = vadd.f32 %v386, %v387
        %v390 = vrot.slane %v389, 4
        %v391 = vadd.f32 %v389, %v390
        %v392 = vrot.slane %v391, 2
        %v393 = vadd.f32 %v391, %v392
        %v394 = vrot.slane %v393, 1
        %v395 = vadd.f32 %v393, %v394
        %v396 = vadd.f32 %v388, %v395
        %vm397 = vcmask 0
        %398 = vst.msk [vmem:[#allocation2] sm:$0x1] %vm397, %v396
        %p399 = scmp.eq.s32.totalorder %s25, 3
        // Predicated region
        $region45: #{tpu_custom_call.1} parent=35 // pred_check
          %p400 = pneg %p399
        $region46: #{tpu_custom_call.1} parent=35 // pred_check_branch
          %402 = sbr.rel (%p400) target = $region48
        $region47: #{tpu_custom_call.1} parent=35 // pred_region
          %v403 = vld [vmem:[#allocation2] sm:$0x1]
          %v404 = vmul.f32 %v403, 0.015625
          %s405 = sld [smem:[#allocation3]]
          %s406 = sld [smem:[#allocation4]]
          %v407 = vstv %s405
          %v408 = vmul.f32 %v404, %v407
          %v409 = vstv %s406
          %v410 = vadd.f32 %v408, %v409
          %v411 = vxor.u32 %v410, 2147483648
          %v412 = vmul.f32 %v411, 1.442695
          %v413 = vpow.pop %v412
          %v414 = vadd.f32 %v413, 1.0
          %v415 = vrcp.pop %v414
          %v416 = vmul.f32 1.0, %v415
          %417 = vst.msk [vmem:[%s269] sm:$0x1] %vm397, %v416
        $region48: #{tpu_custom_call.1} parent=35 // pred_fallthru
          _
        %p418 = scmp.lt.s32.totalorder %s24, 1
        %s419 = scalar_select %p418, %s24, 1
        %s420 = scalar_lea.vmem %s4, %s419
        // Predicated region
        $region49: #{tpu_custom_call.1} parent=35 // pred_check
          %p421 = pneg %p148
        $region50: #{tpu_custom_call.1} parent=35 // pred_check_branch
          %423 = sbr.rel (%p421) target = $region52
        $region51: #{tpu_custom_call.1} parent=35 // pred_region
          _
        $region52: #{tpu_custom_call.1} parent=35 // pred_fallthru
          _
      $region36: #{tpu_custom_call.1} parent=5 // pred_fallthru
        _
      %p424 = scmp.le.s32.totalorder 2, %s15
      // Predicated region
      $region53: #{tpu_custom_call.1} parent=5 // pred_check
        %p425 = pneg %p424
      $region54: #{tpu_custom_call.1} parent=5 // pred_check_branch
        %427 = sbr.rel (%p425) target = $region56
      $region55: #{tpu_custom_call.1} parent=5 // pred_region
        %s428 = ssub.s32 %s15, 2
        // Predicated region
        $region57: #{tpu_custom_call.1} parent=55 // pred_check
          %p429 = pneg %p154
        $region58: #{tpu_custom_call.1} parent=55 // pred_check_branch
          %431 = sbr.rel (%p429) target = $region60
        $region59: #{tpu_custom_call.1} parent=55 // pred_region
          %p432 = scmp.lt.s32.totalorder %s26, 1
          %s433 = scalar_select %p432, %s26, 1
          %s434 = scalar_lea.vmem %s4, %s433
        $region60: #{tpu_custom_call.1} parent=55 // pred_fallthru
          _
      $region56: #{tpu_custom_call.1} parent=5 // pred_fallthru
        _
    $region6: #{tpu_custom_call.1} parent=1 // loop_footer
      %s19 = sadd.s32 1, %s15
    $region7: #{tpu_custom_call.1} parent=1 // loop_footer_branch
      %14 = sbr.rel target = $region3
    $region8: #{tpu_custom_call.1} parent=1 // loop_exit
      _
    %435 = vsyncpa [#allocation6], 1
    %s436 = scalar_lea.sflag [#allocation6], 1
    %437 = vsyncpa %s436, 1

</llo_original>
